<compile_context>
chip_gen: v7x
topology: tpu7x:2x2x1
jax: 0.10.0
libtpu: 0.0.40
codegen_flags: <defaults>
</compile_context>

<pallas_src>
import jax
import jax.numpy as jnp
from jax.experimental import pallas as pl
from jax.experimental.pallas import tpu as pltpu


def _interp_matrix(out_size, in_size):
    """Per-axis bilinear interpolation matrix, PyTorch align_corners=False."""
    scale = in_size / out_size
    i = jnp.arange(out_size, dtype=jnp.float32)
    src = jnp.maximum(scale * (i + 0.5) - 0.5, 0.0)
    x0f = jnp.clip(jnp.floor(src), 0.0, in_size - 1)
    lam = src - x0f
    x0 = x0f.astype(jnp.int32)
    x1 = jnp.minimum(x0 + 1, in_size - 1)
    m = jnp.zeros((out_size, in_size), jnp.float32)
    m = m.at[jnp.arange(out_size), x0].add(1.0 - lam)
    m = m.at[jnp.arange(out_size), x1].add(lam)
    return m


def inject_kernel(xl_ref, xg_ref, wl_ref, bl1_ref, wg_ref, bg_ref, mt_ref, out_ref):
    # Blocks (channel-first, spatially flattened):
    #   xl_ref : (1, C1, HW) bf16      xg_ref : (1, C2, hw) bf16
    #   wl_ref : (C2, C1)    bf16      wg_ref : (C2, C2)    bf16
    #   bl1_ref: (C2, 1)     f32  (= b_l + 1, "+ sig" folded in)
    #   bg_ref : (C2, 1)     f32
    #   mt_ref : (hw, HW)    bf16  (transposed Kronecker bilinear-resize matrix)
    #   out_ref: (1, C2, HW) f32
    xl = xl_ref[0]                                                       # (C1, HW)
    xg = xg_ref[0]                                                       # (C2, hw)

    # local_feat + 1  =  W_l @ x_l + (b_l + 1)   -> (C2, HW), f32 accumulate
    local_p1 = jnp.dot(wl_ref[...], xl,
                       preferred_element_type=jnp.float32) + bl1_ref[...]

    # global_act (low-res)  =  W_g @ x_g + b_g   -> (C2, hw)
    g = jnp.dot(wg_ref[...], xg,
                preferred_element_type=jnp.float32) + bg_ref[...]

    # bilinear upsample (align_corners=False) as a single matmul; the result
    # lands directly in the lane-dense (C2, HW) layout.
    sig = jnp.dot(g.astype(jnp.bfloat16), mt_ref[...],
                  preferred_element_type=jnp.float32)                    # (C2, HW)

    # out = local * sig + sig == (local + 1) * sig
    out_ref[0] = local_p1 * sig


def inject_pallas(xl_flat, xg_flat, w_l, b_l_p1, w_g, b_g, m_t):
    B, C1, HW = xl_flat.shape
    _, C2, hw = xg_flat.shape
    return pl.pallas_call(
        inject_kernel,
        out_shape=jax.ShapeDtypeStruct((B, C2, HW), jnp.float32),
        grid_spec=pltpu.PrefetchScalarGridSpec(
            num_scalar_prefetch=0,
            grid=(B,),
            in_specs=[
                pl.BlockSpec((1, C1, HW), lambda b: (b, 0, 0)),
                pl.BlockSpec((1, C2, hw), lambda b: (b, 0, 0)),
                pl.BlockSpec((C2, C1), lambda b: (0, 0)),
                pl.BlockSpec((C2, 1), lambda b: (0, 0)),
                pl.BlockSpec((C2, C2), lambda b: (0, 0)),
                pl.BlockSpec((C2, 1), lambda b: (0, 0)),
                pl.BlockSpec((hw, HW), lambda b: (0, 0)),
            ],
            out_specs=pl.BlockSpec((1, C2, HW), lambda b: (b, 0, 0)),
        ),
        compiler_params=pltpu.CompilerParams(dimension_semantics=("parallel",)),
    )(xl_flat, xg_flat, w_l, b_l_p1, w_g, b_g, m_t)


if __name__ == "__main__":
    key = jax.random.PRNGKey(0)
    B, dim1, dim2 = 2, 4, 8
    H = W = 16          # local (high-res) spatial size
    h = w = 8           # global (low-res) spatial size
    ks = jax.random.split(key, 6)

    # Inputs in PyTorch NCHW convention.
    x_l = jax.random.normal(ks[0], (B, dim1, H, W), jnp.float32)
    x_g = jax.random.normal(ks[1], (B, dim2, h, w), jnp.float32)

    # Deterministic synthetic parameters: 1x1 conv (no bias, because norm) + BN.
    conv_l = jax.random.normal(ks[2], (dim2, dim1), jnp.float32) * 0.1   # (out, in)
    conv_g = jax.random.normal(ks[3], (dim2, dim2), jnp.float32) * 0.1

    def bn_params(k):
        k1, k2, k3, k4 = jax.random.split(k, 4)
        gamma = 1.0 + 0.1 * jax.random.normal(k1, (dim2,), jnp.float32)
        beta = 0.1 * jax.random.normal(k2, (dim2,), jnp.float32)
        mean = 0.1 * jax.random.normal(k3, (dim2,), jnp.float32)
        var = jnp.abs(jax.random.normal(k4, (dim2,), jnp.float32)) + 0.5
        return gamma, beta, mean, var

    gl, betal, ml, vl = bn_params(ks[4])
    gg, betag, mg, vg = bn_params(ks[5])
    eps = 1e-5

    # Fold conv1x1 (no bias) + BN (eval mode) into channel-first affine:
    # y = W_eff @ x + b_eff  with  W_eff (Cout, Cin),  b_eff (Cout, 1).
    sl = gl / jnp.sqrt(vl + eps)
    W_l = conv_l * sl[:, None]                 # (dim2, dim1)
    b_l = (betal - ml * sl)[:, None]           # (dim2, 1)
    sg = gg / jnp.sqrt(vg + eps)
    W_g = conv_g * sg[:, None]                 # (dim2, dim2)
    b_g = (betag - mg * sg)[:, None]           # (dim2, 1)

    # Bilinear resize (align_corners=False) as a matmul: sig = g @ (RH (x) RW)^T.
    RH = _interp_matrix(H, h)                  # (H, h)
    RW = _interp_matrix(W, w)                  # (W, w)
    M_T = jnp.kron(RH, RW).T                   # (h*w, H*W)

    # Native NCHW flattening -> channel-first (B, C, HW); NO transposes needed.
    xl_flat = x_l.reshape(B, dim1, H * W)
    xg_flat = x_g.reshape(B, dim2, h * w)

    # bf16 matmul operands (f32 accumulation in-kernel); biases stay f32.
    out = inject_pallas(
        xl_flat.astype(jnp.bfloat16),
        xg_flat.astype(jnp.bfloat16),
        W_l.astype(jnp.bfloat16),
        b_l + 1.0,                              # "+ sig" folded into local bias
        W_g.astype(jnp.bfloat16),
        b_g,
        M_T.astype(jnp.bfloat16),
    )
    out = jax.block_until_ready(out)

    # Pure-JAX f32 reference (separable RH / RW einsum path), PyTorch semantics.
    local_ref = jnp.einsum('oc,bcs->bos', W_l, xl_flat) + b_l[None]
    g_ref = (jnp.einsum('oc,bcs->bos', W_g, xg_flat) + b_g[None]).reshape(B, dim2, h, w)
    sig_ref = jnp.einsum('Hh,bchw->bcHw', RH, g_ref)
    sig_ref = jnp.einsum('Ww,bcHw->bcHW', RW, sig_ref).reshape(B, dim2, H * W)
    ref = local_ref * sig_ref + sig_ref

    # bf16 operands lose ~3 decimal digits -> loosened tolerance vs f32 reference.
    max_err = float(jnp.max(jnp.abs(out - ref)))
    assert jnp.allclose(out, ref, atol=5e-2, rtol=5e-2), max_err

    # Output is already in NCHW order: just a metadata reshape.
    out_nchw = out.reshape(B, dim2, H, W)
    assert out_nchw.shape == (B, dim2, H, W)

    print("KERNEL_OK")
</pallas_src>

<mosaic_0001>
module attributes {stable_mosaic.version = 11 : i64} {
  func.func @inject_kernel(%arg0: i32, %arg1: memref<1x4x256xbf16, #tpu.memory_space<vmem>>, %arg2: memref<1x8x64xbf16, #tpu.memory_space<vmem>>, %arg3: memref<8x4xbf16, #tpu.memory_space<vmem>>, %arg4: memref<8x1xf32, #tpu.memory_space<vmem>>, %arg5: memref<8x8xbf16, #tpu.memory_space<vmem>>, %arg6: memref<8x1xf32, #tpu.memory_space<vmem>>, %arg7: memref<64x256xbf16, #tpu.memory_space<vmem>>, %arg8: memref<1x8x256xf32, #tpu.memory_space<vmem>>) attributes {dimension_semantics = [#tpu.dimension_semantics<parallel>], iteration_bounds = array<i64: 2>, scalar_prefetch = 0 : i64, scratch_operands = 0 : i64, tpu.core_type = #tpu.core_type<tc>, window_params = [{transform_indices = @transform_0, window_bounds = array<i64: 1, 4, 256>}, {transform_indices = @transform_1, window_bounds = array<i64: 1, 8, 64>}, {pipeline_mode = #tpu.pipeline_mode<synchronous>, transform_indices = @transform_2, window_bounds = array<i64: 8, 4>}, {pipeline_mode = #tpu.pipeline_mode<synchronous>, transform_indices = @transform_3, window_bounds = array<i64: 8, 1>}, {pipeline_mode = #tpu.pipeline_mode<synchronous>, transform_indices = @transform_4, window_bounds = array<i64: 8, 8>}, {pipeline_mode = #tpu.pipeline_mode<synchronous>, transform_indices = @transform_5, window_bounds = array<i64: 8, 1>}, {pipeline_mode = #tpu.pipeline_mode<synchronous>, transform_indices = @transform_6, window_bounds = array<i64: 64, 256>}, {transform_indices = @transform_7, window_bounds = array<i64: 1, 8, 256>}]} {
    %c0 = arith.constant 0 : index
    %c0_0 = arith.constant 0 : index
    %c0_1 = arith.constant 0 : index
    %0 = vector.load %arg1[%c0, %c0_0, %c0_1] : memref<1x4x256xbf16, #tpu.memory_space<vmem>>, vector<1x4x256xbf16>
    %1 = vector.shape_cast %0 : vector<1x4x256xbf16> to vector<4x256xbf16>
    %c0_2 = arith.constant 0 : index
    %c0_3 = arith.constant 0 : index
    %c0_4 = arith.constant 0 : index
    %2 = vector.load %arg2[%c0_2, %c0_3, %c0_4] : memref<1x8x64xbf16, #tpu.memory_space<vmem>>, vector<1x8x64xbf16>
    %3 = vector.shape_cast %2 : vector<1x8x64xbf16> to vector<8x64xbf16>
    %c0_5 = arith.constant 0 : index
    %c0_6 = arith.constant 0 : index
    %4 = vector.load %arg3[%c0_5, %c0_6] : memref<8x4xbf16, #tpu.memory_space<vmem>>, vector<8x4xbf16>
    %cst = arith.constant dense<0.000000e+00> : vector<8x256xf32>
    %5 = tpu.matmul %4, %1, %cst {dimension_numbers = #tpu.dot_dimension_numbers<[1], [0], [0], [1], [0, 0, 1, 1], [], []>} : vector<8x4xbf16>, vector<4x256xbf16>, vector<8x256xf32> -> vector<8x256xf32>
    %c0_7 = arith.constant 0 : index
    %c0_8 = arith.constant 0 : index
    %6 = vector.load %arg4[%c0_7, %c0_8] : memref<8x1xf32, #tpu.memory_space<vmem>>, vector<8x1xf32>
    %7 = vector.broadcast %6 : vector<8x1xf32> to vector<8x256xf32>
    %8 = arith.addf %5, %7 : vector<8x256xf32>
    %c0_9 = arith.constant 0 : index
    %c0_10 = arith.constant 0 : index
    %9 = vector.load %arg5[%c0_9, %c0_10] : memref<8x8xbf16, #tpu.memory_space<vmem>>, vector<8x8xbf16>
    %cst_11 = arith.constant dense<0.000000e+00> : vector<8x64xf32>
    %10 = tpu.matmul %9, %3, %cst_11 {dimension_numbers = #tpu.dot_dimension_numbers<[1], [0], [0], [1], [0, 0, 1, 1], [], []>} : vector<8x8xbf16>, vector<8x64xbf16>, vector<8x64xf32> -> vector<8x64xf32>
    %c0_12 = arith.constant 0 : index
    %c0_13 = arith.constant 0 : index
    %11 = vector.load %arg6[%c0_12, %c0_13] : memref<8x1xf32, #tpu.memory_space<vmem>>, vector<8x1xf32>
    %12 = vector.broadcast %11 : vector<8x1xf32> to vector<8x64xf32>
    %13 = arith.addf %10, %12 : vector<8x64xf32>
    %14 = arith.truncf %13 : vector<8x64xf32> to vector<8x64xbf16>
    %c0_14 = arith.constant 0 : index
    %c0_15 = arith.constant 0 : index
    %15 = vector.load %arg7[%c0_14, %c0_15] : memref<64x256xbf16, #tpu.memory_space<vmem>>, vector<64x256xbf16>
    %cst_16 = arith.constant dense<0.000000e+00> : vector<8x256xf32>
    %16 = tpu.matmul %14, %15, %cst_16 {dimension_numbers = #tpu.dot_dimension_numbers<[1], [0], [0], [1], [0, 0, 1, 1], [], []>} : vector<8x64xbf16>, vector<64x256xbf16>, vector<8x256xf32> -> vector<8x256xf32>
    %17 = arith.mulf %8, %16 : vector<8x256xf32>
    %c0_17 = arith.constant 0 : index
    %c0_18 = arith.constant 0 : index
    %c0_19 = arith.constant 0 : index
    %18 = vector.load %arg8[%c0_17, %c0_18, %c0_19] : memref<1x8x256xf32, #tpu.memory_space<vmem>>, vector<1x8x256xf32>
    %19 = vector.shape_cast %18 : vector<1x8x256xf32> to vector<8x256xf32>
    %20 = vector.shape_cast %17 : vector<8x256xf32> to vector<1x8x256xf32>
    tpu.vector_store %arg8[%c0_17, %c0_18, %c0_19], %20 {strides = array<i32>} : memref<1x8x256xf32, #tpu.memory_space<vmem>>, vector<1x8x256xf32>,
    return
  }
  func.func @transform_0(%arg0: i32) -> (i32, i32, i32) {
    %c0_i32 = arith.constant 0 : i32
    %c0_i32_0 = arith.constant 0 : i32
    %c0_i32_1 = arith.constant 0 : i32
    return %arg0, %c0_i32, %c0_i32_0 : i32, i32, i32
  }
  func.func @transform_1(%arg0: i32) -> (i32, i32, i32) {
    %c0_i32 = arith.constant 0 : i32
    %c0_i32_0 = arith.constant 0 : i32
    %c0_i32_1 = arith.constant 0 : i32
    return %arg0, %c0_i32, %c0_i32_0 : i32, i32, i32
  }
  func.func @transform_2(%arg0: i32) -> (i32, i32) {
    %c0_i32 = arith.constant 0 : i32
    %c0_i32_0 = arith.constant 0 : i32
    %c0_i32_1 = arith.constant 0 : i32
    return %c0_i32, %c0_i32_0 : i32, i32
  }
  func.func @transform_3(%arg0: i32) -> (i32, i32) {
    %c0_i32 = arith.constant 0 : i32
    %c0_i32_0 = arith.constant 0 : i32
    %c0_i32_1 = arith.constant 0 : i32
    return %c0_i32, %c0_i32_0 : i32, i32
  }
  func.func @transform_4(%arg0: i32) -> (i32, i32) {
    %c0_i32 = arith.constant 0 : i32
    %c0_i32_0 = arith.constant 0 : i32
    %c0_i32_1 = arith.constant 0 : i32
    return %c0_i32, %c0_i32_0 : i32, i32
  }
  func.func @transform_5(%arg0: i32) -> (i32, i32) {
    %c0_i32 = arith.constant 0 : i32
    %c0_i32_0 = arith.constant 0 : i32
    %c0_i32_1 = arith.constant 0 : i32
    return %c0_i32, %c0_i32_0 : i32, i32
  }
  func.func @transform_6(%arg0: i32) -> (i32, i32) {
    %c0_i32 = arith.constant 0 : i32
    %c0_i32_0 = arith.constant 0 : i32
    %c0_i32_1 = arith.constant 0 : i32
    return %c0_i32, %c0_i32_0 : i32, i32
  }
  func.func @transform_7(%arg0: i32) -> (i32, i32, i32) {
    %c0_i32 = arith.constant 0 : i32
    %c0_i32_0 = arith.constant 0 : i32
    %c0_i32_1 = arith.constant 0 : i32
    return %arg0, %c0_i32, %c0_i32_0 : i32, i32, i32
  }
}

</mosaic_0001>

<llo_original>
// kernel: tpu_custom_call.1
$region0: #{tpu_custom_call.1}
  #allocation0 [shape = 'u32[]', space=smem, size = 0x4, offset = 0x4, fixed_abs, tag = 'smem constant byte address 0x4 - core index']
  #allocation1 [shape = 'u32[144,128]{1,0:T(1,128)}', space=vmem, size = 0x12000, scoped, tag = 'internal scratch']
  %s0 = inlined_call_operand.vmem [shape: bf16[2,4,256], index: 0, kind: input, shape index: {}]
  %s1 = inlined_call_operand.vmem [shape: bf16[2,8,64], index: 1, kind: input, shape index: {}]
  %s2 = inlined_call_operand.vmem [shape: bf16[8,4], index: 2, kind: input, shape index: {}]
  %s3 = inlined_call_operand.vmem [shape: f32[8,1], index: 3, kind: input, shape index: {}]
  %s4 = inlined_call_operand.vmem [shape: bf16[8,8], index: 4, kind: input, shape index: {}]
  %s5 = inlined_call_operand.vmem [shape: f32[8,1], index: 5, kind: input, shape index: {}]
  %s6 = inlined_call_operand.hbm [shape: bf16[64,256], index: 6, kind: input, shape index: {}]
  %s7 = inlined_call_operand.hbm [shape: f32[2,8,256], index: 7, kind: output, shape index: {}]
  %s8 = sld [smem:[#allocation0]]
  $region65: #{tpu_custom_call.1} parent=0
    _
  %s10 = ssub.s32 1, %s8
  %s11 = scalar_select 0, %s10, %s8
  $region1: #{tpu_custom_call.1} parent=0
    #allocation2 [shape = 'u8[32768]{0}', space=vmem, size = 0x8000, scoped, tag = 'input window, operand 6, single buffered']
    #allocation3 [shape = 's32[2]{0}', space=sflag, size = 0x8, scoped, tag = 'scoped memory for tpu_custom_call.1']
    #allocation4 [shape = 's32[2]{0}', space=sflag, size = 0x8, scoped, tag = 'scoped memory for tpu_custom_call.1']
    #allocation5 [shape = 'u8[16384]{0}', space=vmem, size = 0x4000, scoped, tag = 'output window, operand 0']
    %12 = vsyncpa [#allocation3], 0
    %13 = vsyncpa [#allocation4], 0
    %s14 = scalar_lea.sflag [#allocation4], 1
    %15 = vsyncpa %s14, 0
    loop: start=0, step=1, limit=4
    $region2: #{tpu_custom_call.1} parent=1 // loop_pre_header
      _
    $region3: #{tpu_custom_call.1} parent=1 // loop_header
      %s17 = sphi 0, %s21
      %p18 = scmp.ge.s32.totalorder %s17, 4
      %s27 = sphi 0, %s29
      %s30 = sphi 0, %s27
      %s31 = sphi 0, %s30
      %s47 = sphi 0, %s31
      %s53 = sphi 0, %s55
      %s56 = sphi 0, %s53
      %s57 = sphi 0, %s56
      %s73 = sphi 0, %s57
      %s77 = sphi 0, %s77
      %s79 = sphi 0, %s77
      %s80 = sphi 0, %s79
      %s94 = sphi 0, %s80
      %s98 = sphi 0, %s98
      %s100 = sphi 0, %s98
      %s101 = sphi 0, %s100
      %s115 = sphi 0, %s101
      %s119 = sphi 0, %s119
      %s121 = sphi 0, %s119
      %s122 = sphi 0, %s121
      %s136 = sphi 0, %s122
      %s140 = sphi 0, %s140
      %s142 = sphi 0, %s140
      %s143 = sphi 0, %s142
      %s157 = sphi 0, %s143
      %s161 = sphi 0, %s161
      %s163 = sphi 0, %s161
      %s164 = sphi 0, %s163
      %s178 = sphi 0, %s164
      %s184 = sphi 0, %s186
      %s187 = sphi 0, %s184
      %s188 = sphi 0, %s187
      %s204 = sphi 0, %s188
    $region4: #{tpu_custom_call.1} parent=1 // loop_header_branch
      %20 = sbr.rel (%p18) target = $region8
    $region5: #{tpu_custom_call.1} parent=1 // loop_body
      %s22 = ssub.s32 %s17, 1
      %s23 = ssub.s32 %s17, 2
      %s24 = sadd.s32 %s17, 1
      %s25 = ssub.s32 %s17, %s24
      %p26 = scmp.eq.s32.totalorder %s25, 0
      %s28 = sadd.s32 %s27, 1
      %s29 = scalar_select %p26, %s27, %s28
      %p32 = pneg %p26
      %p33 = scmp.eq.s32.totalorder %s17, 1
      %p34 = por %p32, %p33
      %p35 = scmp.ne.s32.totalorder %s27, %s30
      %p36 = scmp.eq.s32.totalorder %s17, 0
      %p37 = por %p35, %p36
      %p38 = scmp.ne.s32.totalorder %s27, %s30
      %p39 = scmp.eq.s32.totalorder %s22, 1
      %p40 = por %p38, %p39
      %p41 = scmp.ne.s32.totalorder %s30, %s31
      %p42 = scmp.eq.s32.totalorder %s22, 0
      %p43 = por %p41, %p42
      %p44 = scmp.ne.s32.totalorder %s30, %s31
      %p45 = scmp.eq.s32.totalorder %s23, 1
      %p46 = por %p44, %p45
      %p48 = scmp.ne.s32.totalorder %s31, %s47
      %p49 = scmp.eq.s32.totalorder %s23, 0
      %p50 = por %p48, %p49
      %s51 = ssub.s32 %s17, %s24
      %p52 = scmp.eq.s32.totalorder %s51, 0
      %s54 = sadd.s32 %s53, 1
      %s55 = scalar_select %p52, %s53, %s54
      %p58 = pneg %p52
      %p59 = scmp.eq.s32.totalorder %s17, 1
      %p60 = por %p58, %p59
      %p61 = scmp.ne.s32.totalorder %s53, %s56
      %p62 = scmp.eq.s32.totalorder %s17, 0
      %p63 = por %p61, %p62
      %p64 = scmp.ne.s32.totalorder %s53, %s56
      %p65 = scmp.eq.s32.totalorder %s22, 1
      %p66 = por %p64, %p65
      %p67 = scmp.ne.s32.totalorder %s56, %s57
      %p68 = scmp.eq.s32.totalorder %s22, 0
      %p69 = por %p67, %p68
      %p70 = scmp.ne.s32.totalorder %s56, %s57
      %p71 = scmp.eq.s32.totalorder %s23, 1
      %p72 = por %p70, %p71
      %p74 = scmp.ne.s32.totalorder %s57, %s73
      %p75 = scmp.eq.s32.totalorder %s23, 0
      %p76 = por %p74, %p75
      %s78 = sadd.s32 %s77, 1
      %p81 = scmp.eq.s32.totalorder %s17, 1
      %p82 = scmp.ne.s32.totalorder %s77, %s79
      %p83 = scmp.eq.s32.totalorder %s17, 0
      %p84 = por %p82, %p83
      %p85 = scmp.ne.s32.totalorder %s77, %s79
      %p86 = scmp.eq.s32.totalorder %s22, 1
      %p87 = por %p85, %p86
      %p88 = scmp.ne.s32.totalorder %s79, %s80
      %p89 = scmp.eq.s32.totalorder %s22, 0
      %p90 = por %p88, %p89
      %p91 = scmp.ne.s32.totalorder %s79, %s80
      %p92 = scmp.eq.s32.totalorder %s23, 1
      %p93 = por %p91, %p92
      %p95 = scmp.ne.s32.totalorder %s80, %s94
      %p96 = scmp.eq.s32.totalorder %s23, 0
      %p97 = por %p95, %p96
      %s99 = sadd.s32 %s98, 1
      %p102 = scmp.eq.s32.totalorder %s17, 1
      %p103 = scmp.ne.s32.totalorder %s98, %s100
      %p104 = scmp.eq.s32.totalorder %s17, 0
      %p105 = por %p103, %p104
      %p106 = scmp.ne.s32.totalorder %s98, %s100
      %p107 = scmp.eq.s32.totalorder %s22, 1
      %p108 = por %p106, %p107
      %p109 = scmp.ne.s32.totalorder %s100, %s101
      %p110 = scmp.eq.s32.totalorder %s22, 0
      %p111 = por %p109, %p110
      %p112 = scmp.ne.s32.totalorder %s100, %s101
      %p113 = scmp.eq.s32.totalorder %s23, 1
      %p114 = por %p112, %p113
      %p116 = scmp.ne.s32.totalorder %s101, %s115
      %p117 = scmp.eq.s32.totalorder %s23, 0
      %p118 = por %p116, %p117
      %s120 = sadd.s32 %s119, 1
      %p123 = scmp.eq.s32.totalorder %s17, 1
      %p124 = scmp.ne.s32.totalorder %s119, %s121
      %p125 = scmp.eq.s32.totalorder %s17, 0
      %p126 = por %p124, %p125
      %p127 = scmp.ne.s32.totalorder %s119, %s121
      %p128 = scmp.eq.s32.totalorder %s22, 1
      %p129 = por %p127, %p128
      %p130 = scmp.ne.s32.totalorder %s121, %s122
      %p131 = scmp.eq.s32.totalorder %s22, 0
      %p132 = por %p130, %p131
      %p133 = scmp.ne.s32.totalorder %s121, %s122
      %p134 = scmp.eq.s32.totalorder %s23, 1
      %p135 = por %p133, %p134
      %p137 = scmp.ne.s32.totalorder %s122, %s136
      %p138 = scmp.eq.s32.totalorder %s23, 0
      %p139 = por %p137, %p138
      %s141 = sadd.s32 %s140, 1
      %p144 = scmp.eq.s32.totalorder %s17, 1
      %p145 = scmp.ne.s32.totalorder %s140, %s142
      %p146 = scmp.eq.s32.totalorder %s17, 0
      %p147 = por %p145, %p146
      %p148 = scmp.ne.s32.totalorder %s140, %s142
      %p149 = scmp.eq.s32.totalorder %s22, 1
      %p150 = por %p148, %p149
      %p151 = scmp.ne.s32.totalorder %s142, %s143
      %p152 = scmp.eq.s32.totalorder %s22, 0
      %p153 = por %p151, %p152
      %p154 = scmp.ne.s32.totalorder %s142, %s143
      %p155 = scmp.eq.s32.totalorder %s23, 1
      %p156 = por %p154, %p155
      %p158 = scmp.ne.s32.totalorder %s143, %s157
      %p159 = scmp.eq.s32.totalorder %s23, 0
      %p160 = por %p158, %p159
      %s162 = sadd.s32 %s161, 1
      %p165 = scmp.eq.s32.totalorder %s17, 1
      %p166 = scmp.ne.s32.totalorder %s161, %s163
      %p167 = scmp.eq.s32.totalorder %s17, 0
      %p168 = por %p166, %p167
      %p169 = scmp.ne.s32.totalorder %s161, %s163
      %p170 = scmp.eq.s32.totalorder %s22, 1
      %p171 = por %p169, %p170
      %p172 = scmp.ne.s32.totalorder %s163, %s164
      %p173 = scmp.eq.s32.totalorder %s22, 0
      %p174 = por %p172, %p173
      %p175 = scmp.ne.s32.totalorder %s163, %s164
      %p176 = scmp.eq.s32.totalorder %s23, 1
      %p177 = por %p175, %p176
      %p179 = scmp.ne.s32.totalorder %s164, %s178
      %p180 = scmp.eq.s32.totalorder %s23, 0
      %p181 = por %p179, %p180
      %s182 = ssub.s32 %s17, %s24
      %p183 = scmp.eq.s32.totalorder %s182, 0
      %s185 = sadd.s32 %s184, 1
      %s186 = scalar_select %p183, %s184, %s185
      %p189 = pneg %p183
      %p190 = scmp.eq.s32.totalorder %s17, 1
      %p191 = por %p189, %p190
      %p192 = scmp.ne.s32.totalorder %s184, %s187
      %p193 = scmp.eq.s32.totalorder %s17, 0
      %p194 = por %p192, %p193
      %p195 = scmp.ne.s32.totalorder %s184, %s187
      %p196 = scmp.eq.s32.totalorder %s22, 1
      %p197 = por %p195, %p196
      %p198 = scmp.ne.s32.totalorder %s187, %s188
      %p199 = scmp.eq.s32.totalorder %s22, 0
      %p200 = por %p198, %p199
      %p201 = scmp.ne.s32.totalorder %s187, %s188
      %p202 = scmp.eq.s32.totalorder %s23, 1
      %p203 = por %p201, %p202
      %p205 = scmp.ne.s32.totalorder %s188, %s204
      %p206 = scmp.eq.s32.totalorder %s23, 0
      %p207 = por %p205, %p206
      %p208 = scmp.le.s32.totalorder 1, %s17
      %p209 = scmp.lt.s32.totalorder %s17, 3
      %p210 = pnand %p208, %p209
      %p211 = pneg %p210
      // Predicated region
      $region9: #{tpu_custom_call.1} parent=5 // pred_check
        _
      $region10: #{tpu_custom_call.1} parent=5 // pred_check_branch
        %213 = sbr.rel (%p210) target = $region12
      $region11: #{tpu_custom_call.1} parent=5 // pred_region
        %s214 = ssub.s32 %s17, 1
        // Predicated region
        $region13: #{tpu_custom_call.1} parent=11 // pred_check
          %p215 = pneg %p90
        $region14: #{tpu_custom_call.1} parent=11 // pred_check_branch
          %217 = sbr.rel (%p215) target = $region16
        $region15: #{tpu_custom_call.1} parent=11 // pred_region
          _
        $region16: #{tpu_custom_call.1} parent=11 // pred_fallthru
          _
        // Predicated region
        $region17: #{tpu_custom_call.1} parent=11 // pred_check
          %p218 = pneg %p111
        $region18: #{tpu_custom_call.1} parent=11 // pred_check_branch
          %220 = sbr.rel (%p218) target = $region20
        $region19: #{tpu_custom_call.1} parent=11 // pred_region
          _
        $region20: #{tpu_custom_call.1} parent=11 // pred_fallthru
          _
        // Predicated region
        $region21: #{tpu_custom_call.1} parent=11 // pred_check
          %p221 = pneg %p132
        $region22: #{tpu_custom_call.1} parent=11 // pred_check_branch
          %223 = sbr.rel (%p221) target = $region24
        $region23: #{tpu_custom_call.1} parent=11 // pred_region
          _
        $region24: #{tpu_custom_call.1} parent=11 // pred_fallthru
          _
        // Predicated region
        $region25: #{tpu_custom_call.1} parent=11 // pred_check
          %p224 = pneg %p153
        $region26: #{tpu_custom_call.1} parent=11 // pred_check_branch
          %226 = sbr.rel (%p224) target = $region28
        $region27: #{tpu_custom_call.1} parent=11 // pred_region
          _
        $region28: #{tpu_custom_call.1} parent=11 // pred_fallthru
          _
        // Predicated region
        $region29: #{tpu_custom_call.1} parent=11 // pred_check
          %p227 = pneg %p174
        $region30: #{tpu_custom_call.1} parent=11 // pred_check_branch
          %229 = sbr.rel (%p227) target = $region32
        $region31: #{tpu_custom_call.1} parent=11 // pred_region
          %s231 = ssub.s32 1024, 1024
          %232 = vsyncadd [#allocation3], %s231
          %s233 = sshll.u32 [#allocation2], 4
          %s234 = int_to_ptr.vmem [resolvable:$true] %s233
          %239 = dma.hbm_to_vmem [thread:$0]  %s6, 1024, %s234, [#allocation3], 128, 128, 8
        $region32: #{tpu_custom_call.1} parent=11 // pred_fallthru
          _
      $region12: #{tpu_custom_call.1} parent=5 // pred_fallthru
        _
      %p240 = scmp.lt.s32.totalorder %s17, 2
      // Predicated region
      $region33: #{tpu_custom_call.1} parent=5 // pred_check
        %p241 = pneg %p240
      $region34: #{tpu_custom_call.1} parent=5 // pred_check_branch
        %243 = sbr.rel (%p241) target = $region36
      $region35: #{tpu_custom_call.1} parent=5 // pred_region
        // Predicated region
        $region37: #{tpu_custom_call.1} parent=35 // pred_check
          %p244 = pneg %p37
        $region38: #{tpu_custom_call.1} parent=35 // pred_check_branch
          %246 = sbr.rel (%p244) target = $region40
        $region39: #{tpu_custom_call.1} parent=35 // pred_region
          %p247 = scmp.lt.s32.totalorder %s17, 1
          %s248 = scalar_select %p247, %s17, 1
          %s249 = smul.addr %s248, 2
          %s250 = smul.addr %s249, 2
          %s251 = scalar_lea.vmem %s0, %s250
        $region40: #{tpu_custom_call.1} parent=35 // pred_fallthru
          _
        // Predicated region
        $region41: #{tpu_custom_call.1} parent=35 // pred_check
          %p252 = pneg %p63
        $region42: #{tpu_custom_call.1} parent=35 // pred_check_branch
          %254 = sbr.rel (%p252) target = $region44
        $region43: #{tpu_custom_call.1} parent=35 // pred_region
          %p255 = scmp.lt.s32.totalorder %s17, 1
          %s256 = scalar_select %p255, %s17, 1
          %s257 = smul.addr %s256, 4
          %s258 = scalar_lea.vmem %s1, %s257
        $region44: #{tpu_custom_call.1} parent=35 // pred_fallthru
          _
      $region36: #{tpu_custom_call.1} parent=5 // pred_fallthru
        _
      %p259 = scmp.le.s32.totalorder 1, %s17
      %p260 = scmp.lt.s32.totalorder %s17, 3
      %p261 = pnand %p259, %p260
      %p262 = pneg %p261
      // Predicated region
      $region45: #{tpu_custom_call.1} parent=5 // pred_check
        _
      $region46: #{tpu_custom_call.1} parent=5 // pred_check_branch
        %264 = sbr.rel (%p261) target = $region48
      $region47: #{tpu_custom_call.1} parent=5 // pred_region
        %s265 = ssub.s32 %s17, 1
        // Predicated region
        $region49: #{tpu_custom_call.1} parent=47 // pred_check
          %p266 = pneg %p174
        $region50: #{tpu_custom_call.1} parent=47 // pred_check_branch
          %268 = sbr.rel (%p266) target = $region52
        $region51: #{tpu_custom_call.1} parent=47 // pred_region
          %269 = dma.done [#allocation3], 1024
        $region52: #{tpu_custom_call.1} parent=47 // pred_fallthru
          _
        %p270 = scmp.lt.s32.totalorder %s22, 1
        %s271 = scalar_select %p270, %s22, 1
        %s272 = smul.addr %s271, 2
        %s273 = smul.addr %s272, 2
        %s274 = scalar_lea.vmem %s0, %s273
        %p275 = pneg %p43
        %p276 = pneg %p40
        %p277 = scmp.lt.s32.totalorder %s22, 1
        %s278 = scalar_select %p277, %s22, 1
        %s279 = smul.addr %s278, 4
        %s280 = scalar_lea.vmem %s1, %s279
        %p281 = pneg %p69
        %p282 = pneg %p66
        %p283 = pneg %p90
        %p284 = pneg %p87
        %p285 = pneg %p111
        %p286 = pneg %p108
        %p287 = pneg %p132
        %p288 = pneg %p129
        %p289 = pneg %p153
        %p290 = pneg %p150
        %p291 = pneg %p174
        %p292 = pneg %p171
        %p293 = pneg %p200
        %p294 = pneg %p197
        %s295 = sand.u32 %s187, 1
        %s296 = scalar_lea.sflag [#allocation4], %s295
        %s297 = sand.u32 %s187, 1
        %s298 = smul.addr %s297, 16
        %s299 = scalar_lea.vmem [#allocation5], %s298
        %p300 = scmp.lt.s32.totalorder %s22, 1
        %s301 = scalar_select %p300, %s22, 1
        %s302 = smul.addr %s301, 2
        %s303 = smul.addr %s302, 2
        %s304 = scalar_lea.vmem %s0, %s303
        %p305 = scmp.lt.s32.totalorder %s22, 1
        %s306 = scalar_select %p305, %s22, 1
        %s307 = smul.addr %s306, 4
        %s308 = scalar_lea.vmem %s1, %s307
        %v310 = vld [vmem:[%s304] sm:$0xf]
        %v311 = vld [vmem:[%s308] sm:$0xf]
        %v312 = vld [vmem:[%s2] sm:$0xf]
        %v313 = vld [vmem:[%s3] sm:$0xff]
        %315 = vset.pattern.permute.xlu0 0
        %316 = vperm.xlu0 %315, %v313
        %v317 = vpop.permute.xlu0 %316
        %v321 = vunpack.c.l.s4 1983009808
        %v322 = vunpack.c.0.s8 %v321
        %v323 = vlaneseq
        %v324 = vshrl.u32 %v323, 7
        %v325 = vsub.s32 %v322, %v324
        %v326 = vrot.slane %v310, %v325
        %v327 = vcombine.high %v326, %v326
        %vm328 = vcmask 31744
        %v330 = vsel %vm328, %v312, 0
        %vm332 = vcmask 1041408
        %v334 = vsel %vm332, %v326, 0
        %v337 = vsel %vm332, %v327, 0
        %339 = vmatprep.subr.bf16.mxu0 %v337
        %340 = vmatpush1.bf16.msra.mxu0 %v334
        %341 = vmatprep.subr.bf16.mxu0 0
        %342 = vmatpush1.bf16.msra.mxu0 0
        %343 = vmatprep.subr.bf16.mxu0 0
        %344 = vmatpush1.bf16.msra.mxu0 0
        %345 = vmatprep.subr.bf16.mxu0 0
        %346 = vmatpush1.bf16.msra.mxu0 0
        %347 = vmatprep.subr.bf16.mxu0 0
        %348 = vmatpush1.bf16.msra.mxu0 0
        %349 = vmatprep.subr.bf16.mxu0 0
        %350 = vmatpush1.bf16.msra.mxu0 0
        %351 = vmatprep.subr.bf16.mxu0 0
        %352 = vmatpush1.bf16.msra.mxu0 0
        %353 = vmatprep.subr.bf16.mxu0 0
        %354 = vmatpush1.bf16.msra.mxu0 0
        %355 = vmatprep.subr.bf16.mxu0 0
        %356 = vmatpush1.bf16.msra.mxu0 0
        %357 = vmatprep.subr.bf16.mxu0 0
        %358 = vmatpush1.bf16.msra.mxu0 0
        %359 = vmatprep.subr.bf16.mxu0 0
        %360 = vmatpush1.bf16.msra.mxu0 0
        %361 = vmatprep.subr.bf16.mxu0 0
        %362 = vmatpush1.bf16.msra.mxu0 0
        %363 = vmatprep.subr.bf16.mxu0 0
        %364 = vmatpush1.bf16.msra.mxu0 0
        %365 = vmatprep.subr.bf16.mxu0 0
        %366 = vmatpush1.bf16.msra.mxu0 0
        %367 = vmatprep.subr.bf16.mxu0 0
        %368 = vmatpush1.bf16.msra.mxu0 0
        %369 = vmatprep.subr.bf16.mxu0 0
        %370 = vmatpush1.bf16.msra.mxu0 0
        %371 = vmatprep.mubr.bf16.mxu0 0
        %372 = vmatmul.mubr.bf16.gmra.mrb[0].mxu0 %v330
        %v373 = vpop.f32.mrb[0].mxu0
        %v374 = vadd.f32 %v317, %v373
        %v375 = vpop.f32.mrb[0].mxu0
        %v376 = vadd.f32 %v317, %v375
        %v377 = vpop.f32.mrb[0].mxu0
        %v378 = vpop.f32.mrb[0].mxu0
        %379 = vdwg.mxu0
        %v380 = vld [vmem:[%s4] sm:$0xf]
        %v381 = vld [vmem:[%s5] sm:$0xff]
        %383 = vset.pattern.permute.xlu0 0
        %384 = vperm.xlu0 %383, %v381
        %v385 = vpop.permute.xlu0 %384
        %vm387 = vcmask 64512
        %v389 = vsel %vm387, %v380, 0
        %vm391 = vcmask 1043456
        %v393 = vsel %vm391, %v311, 0
        %395 = vmatprep.subr.bf16.mxu0 0
        %396 = vmatpush1.bf16.msra.mxu0 %v393
        %397 = vmatprep.subr.bf16.mxu0 0
        %398 = vmatpush1.bf16.msra.mxu0 0
        %399 = vmatprep.subr.bf16.mxu0 0
        %400 = vmatpush1.bf16.msra.mxu0 0
        %401 = vmatprep.subr.bf16.mxu0 0
        %402 = vmatpush1.bf16.msra.mxu0 0
        %403 = vmatprep.subr.bf16.mxu0 0
        %404 = vmatpush1.bf16.msra.mxu0 0
        %405 = vmatprep.subr.bf16.mxu0 0
        %406 = vmatpush1.bf16.msra.mxu0 0
        %407 = vmatprep.subr.bf16.mxu0 0
        %408 = vmatpush1.bf16.msra.mxu0 0
        %409 = vmatprep.subr.bf16.mxu0 0
        %410 = vmatpush1.bf16.msra.mxu0 0
        %411 = vmatprep.subr.bf16.mxu0 0
        %412 = vmatpush1.bf16.msra.mxu0 0
        %413 = vmatprep.subr.bf16.mxu0 0
        %414 = vmatpush1.bf16.msra.mxu0 0
        %415 = vmatprep.subr.bf16.mxu0 0
        %416 = vmatpush1.bf16.msra.mxu0 0
        %417 = vmatprep.subr.bf16.mxu0 0
        %418 = vmatpush1.bf16.msra.mxu0 0
        %419 = vmatprep.subr.bf16.mxu0 0
        %420 = vmatpush1.bf16.msra.mxu0 0
        %421 = vmatprep.subr.bf16.mxu0 0
        %422 = vmatpush1.bf16.msra.mxu0 0
        %423 = vmatprep.subr.bf16.mxu0 0
        %424 = vmatpush1.bf16.msra.mxu0 0
        %425 = vmatprep.subr.bf16.mxu0 0
        %426 = vmatpush1.bf16.msra.mxu0 0
        %427 = vmatprep.mubr.bf16.mxu0 0
        %428 = vmatmul.mubr.bf16.gmra.mrb[0].mxu0 %v389
        %v429 = vpop.f32.mrb[0].mxu0
        %v430 = vadd.f32 %v385, %v429
        %v431 = vpop.f32.mrb[0].mxu0
        %v432 = vpop.f32.mrb[0].mxu0
        %v433 = vpop.f32.mrb[0].mxu0
        %434 = vdwg.mxu0
        %v435 = vpack.c.bf16 %v430, %v430
        %v436 = vld [vmem:[#allocation2] sm:$0xff]
        %v437 = vld [vmem:[#allocation2 + $0x8] sm:$0xff]
        %v438 = vld [vmem:[#allocation2 + $0x10] sm:$0xff]
        %v439 = vld [vmem:[#allocation2 + $0x18] sm:$0xff]
        %v440 = vld [vmem:[#allocation2 + $0x20] sm:$0xff]
        %v441 = vld [vmem:[#allocation2 + $0x28] sm:$0xff]
        %v442 = vld [vmem:[#allocation2 + $0x30] sm:$0xff]
        %v443 = vld [vmem:[#allocation2 + $0x38] sm:$0xff]
        %v452 = vunpack.c.l.b16 %v436
        %v453 = vunpack.c.h.b16 %v436
        %v454 = vunpack.c.l.b16 %v437
        %v455 = vunpack.c.h.b16 %v437
        %v456 = vunpack.c.l.b16 %v438
        %v457 = vunpack.c.h.b16 %v438
        %v458 = vunpack.c.l.b16 %v439
        %v459 = vunpack.c.h.b16 %v439
        %v460 = vunpack.c.l.b16 %v440
        %v461 = vunpack.c.h.b16 %v440
        %v462 = vunpack.c.l.b16 %v441
        %v463 = vunpack.c.h.b16 %v441
        %v464 = vunpack.c.l.b16 %v442
        %v465 = vunpack.c.h.b16 %v442
        %v466 = vunpack.c.l.b16 %v443
        %v467 = vunpack.c.h.b16 %v443
        %v468 = vpack.c.b16 %v454, %v452
        %v469 = vpack.c.b16 %v455, %v453
        %v470 = vpack.c.b16 %v458, %v456
        %v471 = vpack.c.b16 %v459, %v457
        %v472 = vpack.c.b16 %v462, %v460
        %v473 = vpack.c.b16 %v463, %v461
        %v474 = vpack.c.b16 %v466, %v464
        %v475 = vpack.c.b16 %v467, %v465
        %vm484 = vcmask 523264
        %v486 = vsel %vm484, %v435, 0
        %488 = vmatprep.subr.bf16.mxu0 %v469
        %489 = vmatpush1.bf16.msra.mxu0 %v468
        %490 = vmatprep.subr.bf16.mxu0 %v471
        %491 = vmatpush1.bf16.msra.mxu0 %v470
        %492 = vmatprep.subr.bf16.mxu0 %v473
        %493 = vmatpush1.bf16.msra.mxu0 %v472
        %494 = vmatprep.subr.bf16.mxu0 %v475
        %495 = vmatpush1.bf16.msra.mxu0 %v474
        %496 = vmatprep.subr.bf16.mxu0 0
        %497 = vmatpush1.bf16.msra.mxu0 0
        %498 = vmatprep.subr.bf16.mxu0 0
        %499 = vmatpush1.bf16.msra.mxu0 0
        %500 = vmatprep.subr.bf16.mxu0 0
        %501 = vmatpush1.bf16.msra.mxu0 0
        %502 = vmatprep.subr.bf16.mxu0 0
        %503 = vmatpush1.bf16.msra.mxu0 0
        %504 = vmatprep.subr.bf16.mxu0 0
        %505 = vmatpush1.bf16.msra.mxu0 0
        %506 = vmatprep.subr.bf16.mxu0 0
        %507 = vmatpush1.bf16.msra.mxu0 0
        %508 = vmatprep.subr.bf16.mxu0 0
        %509 = vmatpush1.bf16.msra.mxu0 0
        %510 = vmatprep.subr.bf16.mxu0 0
        %511 = vmatpush1.bf16.msra.mxu0 0
        %512 = vmatprep.subr.bf16.mxu0 0
        %513 = vmatpush1.bf16.msra.mxu0 0
        %514 = vmatprep.subr.bf16.mxu0 0
        %515 = vmatpush1.bf16.msra.mxu0 0
        %516 = vmatprep.subr.bf16.mxu0 0
        %517 = vmatpush1.bf16.msra.mxu0 0
        %518 = vmatprep.subr.bf16.mxu0 0
        %519 = vmatpush1.bf16.msra.mxu0 0
        %520 = vmatprep.mubr.bf16.mxu0 0
        %521 = vmatmul.mubr.bf16.gmra.mrb[0].mxu0 %v486
        %v522 = vpop.f32.mrb[0].mxu0
        %v523 = vadd.f32 0.0, %v522
        %v524 = vpop.f32.mrb[0].mxu0
        %v525 = vadd.f32 0.0, %v524
        %v526 = vpop.f32.mrb[0].mxu0
        %v527 = vpop.f32.mrb[0].mxu0
        %528 = vdwg.mxu0
        %v529 = vmul.f32 %v374, %v523
        %v530 = vmul.f32 %v376, %v525
        %531 = vst [vmem:[%s299] sm:$0xff] %v529
        %532 = vst [vmem:[%s299 + $0x8] sm:$0xff] %v530
        %s533 = sand.u32 %s187, 1
        %s534 = scalar_lea.sflag [#allocation4], %s533
        %s535 = sand.u32 %s187, 1
        %s536 = smul.addr %s535, 16
        %s537 = scalar_lea.vmem [#allocation5], %s536
        // Predicated region
        $region53: #{tpu_custom_call.1} parent=47 // pred_check
          %p538 = pneg %p197
        $region54: #{tpu_custom_call.1} parent=47 // pred_check_branch
          %540 = sbr.rel (%p538) target = $region56
        $region55: #{tpu_custom_call.1} parent=47 // pred_region
          %s542 = ssub.s32 256, 256
          %543 = vsyncadd %s534, %s542
          %s544 = smul.addr %s22, 2
          %s545 = smul.addr %s544, 128
          %s546 = scalar_lea.hbm %s7, %s545
          %s548 = sshll.u32 %s537, 4
          %s549 = int_to_ptr.vmem [resolvable:$true] %s548
          %551 = dma.vmem_to_hbm [thread:$0]  %s549, 256, %s546, %s534
        $region56: #{tpu_custom_call.1} parent=47 // pred_fallthru
          _
      $region48: #{tpu_custom_call.1} parent=5 // pred_fallthru
        _
      %p552 = scmp.le.s32.totalorder 2, %s17
      // Predicated region
      $region57: #{tpu_custom_call.1} parent=5 // pred_check
        %p553 = pneg %p552
      $region58: #{tpu_custom_call.1} parent=5 // pred_check_branch
        %555 = sbr.rel (%p553) target = $region60
      $region59: #{tpu_custom_call.1} parent=5 // pred_region
        %s556 = ssub.s32 %s17, 2
        // Predicated region
        $region61: #{tpu_custom_call.1} parent=59 // pred_check
          %p557 = pneg %p203
        $region62: #{tpu_custom_call.1} parent=59 // pred_check_branch
          %559 = sbr.rel (%p557) target = $region64
        $region63: #{tpu_custom_call.1} parent=59 // pred_region
          %s560 = sand.u32 %s188, 1
          %s561 = scalar_lea.sflag [#allocation4], %s560
          %s562 = sand.u32 %s188, 1
          %s563 = smul.addr %s562, 16
          %s564 = scalar_lea.vmem [#allocation5], %s563
          %565 = dma.done %s561, 256
        $region64: #{tpu_custom_call.1} parent=59 // pred_fallthru
          _
      $region60: #{tpu_custom_call.1} parent=5 // pred_fallthru
        _
    $region6: #{tpu_custom_call.1} parent=1 // loop_footer
      %s21 = sadd.s32 1, %s17
    $region7: #{tpu_custom_call.1} parent=1 // loop_footer_branch
      %16 = sbr.rel target = $region3
    $region8: #{tpu_custom_call.1} parent=1 // loop_exit
      _
    %566 = vsyncpa [#allocation3], 1
    %s567 = scalar_lea.sflag [#allocation3], 1
    %568 = vsyncpa %s567, 1
    %569 = vsyncpa [#allocation4], 1
    %s570 = scalar_lea.sflag [#allocation4], 1
    %571 = vsyncpa %s570, 1

</llo_original>
